<compile_context>
chip_gen: v6e
topology: v6e:2x2x1
jax: 0.10.0
libtpu: 0.0.40
codegen_flags: <defaults>
</compile_context>

<pallas_src>
import numpy as np

import jax
import jax.numpy as jnp
from jax.experimental import pallas as pl
from jax.experimental.pallas import tpu as pltpu


def _round_up(x: int, m: int) -> int:
    return ((x + m - 1) // m) * m


def _vmem_budget():
    """(working-set budget, scoped-VMEM limit) in bytes for this TPU generation."""
    try:
        cap = int(pltpu.get_tpu_info().vmem_capacity_bytes)
    except Exception:
        cap = 64 << 20          # conservative fallback (v7x physical VMEM)
    return cap // 2, (cap * 3) // 4


def _plan_tiles(n_rows, hw, ohw_pad, in_itemsize, s_itemsize, budget, sub, s_sub):
    """Pick (tn, tk, nk, hw_pad).

    tn: row tile (B*C axis), tk: reduction tile (H*W axis), nk: #K steps,
    hw_pad: padded H*W (== hw unless the K tile does not divide it).
    VMEM accounting uses padded layouts (lanes -> 128, sublanes -> dtype tile)
    times the pipeline buffer count.
    """
    lane = 128

    # Padded footprint of the full membership matrix, single copy.
    s_full = _round_up(hw, s_sub) * ohw_pad * s_itemsize

    if s_full <= budget // 4:
        # S fits comfortably: keep it whole and single-buffered (grid-invariant).
        nk, tk, hw_pad = 1, hw, hw
        s_resident = s_full
    else:
        # K-tile the reduction so S's double-buffered block stays ~budget/4.
        # Prefer a tile that divides hw exactly so the input needs no padding.
        tk_cap = (budget // 4) // (2 * ohw_pad * s_itemsize)
        tk_cap = max(lane, (tk_cap // lane) * lane)
        tk = None
        for cand in range(lane, min(tk_cap, hw) + 1, lane):
            if hw % cand == 0:
                tk = cand
        if tk is not None:
            hw_pad = hw
        else:
            tk = tk_cap
            hw_pad = _round_up(hw, tk)    # zero-padded on host (S rows and X cols)
        nk = hw_pad // tk
        s_resident = 2 * tk * ohw_pad * s_itemsize    # double-buffered along K

    inv_bytes = 8 * ohw_pad * 4                       # tiny f32 row, single buffer
    fixed = s_resident + inv_bytes

    lane_in = tk if nk > 1 else _round_up(hw, lane)
    per_row = (2 * lane_in * in_itemsize              # X block, double-buffered
               + 2 * ohw_pad * in_itemsize            # out block, double-buffered
               + (4 * ohw_pad if nk > 1 else 0))      # f32 accumulator scratch

    avail = max(budget - fixed, per_row * sub)
    tn = max(sub, (avail // per_row) // sub * sub)

    # Keep >= ~4 parallel grid steps: enables megacore sharding on v7x and
    # DMA/compute overlap everywhere (a 1-step grid serializes both).
    cap_tn = max(sub, _round_up(pl.cdiv(n_rows, 4), sub))
    tn = min(tn, cap_tn)
    if n_rows <= sub:
        tn = n_rows     # full-extent block (legal even if not a multiple of 8/16)
    return tn, tk, nk, hw_pad


def _pool_matrices(h, w, oh, ow, hw_pad, ohw_pad, fold_scale):
    """Membership matrix S (hw_pad, ohw_pad) and reciprocal patch sizes (1, ohw_pad).

    Patch boundaries follow the NumPy reference exactly.  When fold_scale, S
    holds 1/patch_size instead of 1.0 (only used on the f32 path).  Padded
    rows/columns are zero, so they contribute nothing to the matmul.
    """
    stride_h = h / oh
    stride_w = w / ow
    s = np.zeros((hw_pad, ohw_pad), dtype=np.float32)
    inv = np.zeros((1, ohw_pad), dtype=np.float32)
    for i in range(oh):
        hs = int(i * stride_h)
        he = min(max(int(np.ceil((i + 1) * stride_h)), hs + 1), h)
        for j in range(ow):
            ws = int(j * stride_w)
            we = min(max(int(np.ceil((j + 1) * stride_w)), ws + 1), w)
            col = i * ow + j
            count = (he - hs) * (we - ws)
            val = 1.0 / count if fold_scale else 1.0
            for hh in range(hs, he):
                s[hh * w + ws:hh * w + we, col] = val
            inv[0, col] = 1.0 / count
    return s, inv


def _make_kernel(nk: int, use_inv: bool):
    """Row-tile x membership-matrix matmul on the MXU with f32 accumulation."""
    def kernel(*refs):
        if use_inv:
            x_ref, s_ref, inv_ref = refs[:3]
            rest = refs[3:]
        else:
            x_ref, s_ref = refs[:2]
            inv_ref = None
            rest = refs[2:]

        if nk == 1:
            (o_ref,) = rest
            sums = jnp.dot(x_ref[...], s_ref[...],
                           preferred_element_type=jnp.float32)
            if inv_ref is not None:
                sums = sums * inv_ref[...]
            o_ref[...] = sums.astype(o_ref.dtype)
        else:
            o_ref, acc_ref = rest
            k = pl.program_id(1)

            @pl.when(k == 0)
            def _():
                acc_ref[...] = jnp.zeros_like(acc_ref)

            acc_ref[...] += jnp.dot(x_ref[...], s_ref[...],
                                    preferred_element_type=jnp.float32)

            @pl.when(k == nk - 1)
            def _():
                res = acc_ref[...]
                if inv_ref is not None:
                    res = res * inv_ref[...]
                o_ref[...] = res.astype(o_ref.dtype)

    return kernel


def adaptive_avg_pool2d(inp: jax.Array, output_size) -> jax.Array:
    """Pallas TPU equivalent of AdaptiveAvgPool2d.forward.

    :param inp: (batch, channels, height, width), floating dtype.
    :return:    (batch, channels, out_h, out_w), same dtype as the input.
    """
    assert inp.ndim == 4, "expected (batch, channels, height, width)"
    assert jnp.issubdtype(inp.dtype, jnp.floating), "floating input required"
    b, c, h, w = inp.shape
    oh, ow = output_size
    dt = inp.dtype

    # Native-precision MXU operands: bf16/f16 keep S in the same dtype (0/1 is
    # exact) with a separate f32 reciprocal; f32 folds the reciprocal into S.
    if dt == jnp.bfloat16 or dt == jnp.float16:
        s_dtype, fold_scale = dt, False
    else:
        s_dtype, fold_scale = jnp.float32, True
        # TODO(synk): optional bf16-cast fast path for f32 inputs (precision tradeoff).

    n, hw, ohw = b * c, h * w, oh * ow
    ohw_pad = _round_up(ohw, 128)                 # lane-dense output columns

    in_itemsize = np.dtype(dt).itemsize
    s_itemsize = np.dtype(s_dtype).itemsize
    sub = 8 if in_itemsize >= 4 else (16 if in_itemsize == 2 else 32)
    s_sub = 8 if s_itemsize >= 4 else 16

    budget, vmem_limit = _vmem_budget()
    tn, tk, nk, hw_pad = _plan_tiles(n, hw, ohw_pad, in_itemsize, s_itemsize,
                                     budget, sub, s_sub)
    # TODO(synk): separable (W-then-H) formulation would shrink S when OH*OW > 128.

    s_np, inv_np = _pool_matrices(h, w, oh, ow, hw_pad, ohw_pad, fold_scale)
    s_dev = jnp.asarray(s_np, dtype=s_dtype)
    inv_dev = jnp.asarray(inv_np)                 # stays f32

    x_rows = inp.reshape(n, hw)                   # glue reshape outside the kernel
    if hw_pad != hw:                              # only for the K-tiled, non-divisible case
        x_rows = jnp.pad(x_rows, ((0, 0), (0, hw_pad - hw)))

    kernel = _make_kernel(nk, use_inv=not fold_scale)

    def run(single_buffer_invariants: bool):
        invariant = (dict(pipeline_mode=pl.Buffered(1))
                     if single_buffer_invariants else {})
        if nk == 1:
            grid = (pl.cdiv(n, tn),)
            x_spec = pl.BlockSpec((tn, hw_pad), lambda i: (i, 0))
            s_spec = pl.BlockSpec((hw_pad, ohw_pad), lambda i: (0, 0), **invariant)
            inv_spec = pl.BlockSpec((1, ohw_pad), lambda i: (0, 0), **invariant)
            o_spec = pl.BlockSpec((tn, ohw_pad), lambda i: (i, 0))
            scratch = []
            dims = ("parallel",)
        else:
            grid = (pl.cdiv(n, tn), nk)
            x_spec = pl.BlockSpec((tn, tk), lambda i, k: (i, k))
            # S changes every K step here -> keep the default double buffering.
            s_spec = pl.BlockSpec((tk, ohw_pad), lambda i, k: (k, 0))
            inv_spec = pl.BlockSpec((1, ohw_pad), lambda i, k: (0, 0), **invariant)
            o_spec = pl.BlockSpec((tn, ohw_pad), lambda i, k: (i, 0))
            scratch = [pltpu.VMEM((tn, ohw_pad), jnp.float32)]
            dims = ("parallel", "arbitrary")

        in_specs = [x_spec, s_spec] + ([] if fold_scale else [inv_spec])
        args = (x_rows, s_dev) + (() if fold_scale else (inv_dev,))
        return pl.pallas_call(
            kernel,
            out_shape=jax.ShapeDtypeStruct((n, ohw_pad), dt),
            grid=grid,
            in_specs=in_specs,
            out_specs=o_spec,
            scratch_shapes=scratch,
            compiler_params=pltpu.CompilerParams(
                dimension_semantics=dims,
                vmem_limit_bytes=vmem_limit,
            ),
        )(*args)

    try:
        out2 = run(single_buffer_invariants=True)
    except Exception:
        # pl.Buffered(1) not available on this jax/backend: fall back to the
        # default double-buffered pipeline (the budget has headroom for it).
        out2 = run(single_buffer_invariants=False)

    return out2[:, :ohw].reshape(b, c, oh, ow)


def _reference(inp_np: np.ndarray, output_size) -> np.ndarray:
    """Direct NumPy port of the module's forward (ground truth)."""
    bsz, ch, h, w = inp_np.shape
    oh, ow = output_size
    out = np.zeros((bsz, ch, oh, ow), dtype=np.float64)
    stride_h = h / oh
    stride_w = w / ow
    for i in range(oh):
        for j in range(ow):
            hs = int(i * stride_h)
            he = int(np.ceil((i + 1) * stride_h))
            ws = int(j * stride_w)
            we = int(np.ceil((j + 1) * stride_w))
            he = max(he, hs + 1)
            we = max(we, ws + 1)
            he = min(he, h)
            we = min(we, w)
            out[:, :, i, j] = inp_np[:, :, hs:he, ws:we].mean(axis=(2, 3))
    return out


if __name__ == "__main__":
    key = jax.random.PRNGKey(0)
    k1, k2, k3 = jax.random.split(key, 3)

    # Case 1: evenly divisible patches, f32 (folded-scale path).
    x1 = jax.random.normal(k1, (2, 4, 16, 16), dtype=jnp.float32)
    y1 = adaptive_avg_pool2d(x1, (4, 4))
    jax.block_until_ready(y1)
    ref1 = _reference(np.asarray(x1), (4, 4))
    assert y1.shape == (2, 4, 4, 4)
    assert np.allclose(np.asarray(y1), ref1, atol=1e-5), "mismatch (even patches)"

    # Case 2: ragged / uneven patches (exercises adaptive boundary logic), f32.
    x2 = jax.random.normal(k2, (2, 3, 7, 5), dtype=jnp.float32)
    y2 = adaptive_avg_pool2d(x2, (3, 2))
    jax.block_until_ready(y2)
    ref2 = _reference(np.asarray(x2), (3, 2))
    assert y2.shape == (2, 3, 3, 2)
    assert np.allclose(np.asarray(y2), ref2, atol=1e-5), "mismatch (ragged patches)"

    # Case 3: bf16 input exercises the native-precision MXU path
    # (bf16 0/1 S, f32 accumulate, separate f32 reciprocal).
    x3 = jax.random.normal(k3, (2, 4, 16, 16), dtype=jnp.bfloat16)
    y3 = adaptive_avg_pool2d(x3, (4, 4))
    jax.block_until_ready(y3)
    ref3 = _reference(np.asarray(x3).astype(np.float32), (4, 4))
    assert y3.shape == (2, 4, 4, 4)
    assert np.allclose(np.asarray(y3).astype(np.float32), ref3, atol=2e-2), \
        "mismatch (bf16 path)"

    print("KERNEL_OK")
</pallas_src>

<mosaic_0001>
module attributes {stable_mosaic.version = 11 : i64} {
  func.func @kernel(%arg0: i32, %arg1: memref<8x256xf32, #tpu.memory_space<vmem>>, %arg2: memref<256x128xf32, #tpu.memory_space<vmem>>, %arg3: memref<8x128xf32, #tpu.memory_space<vmem>>) attributes {dimension_semantics = [#tpu.dimension_semantics<parallel>], iteration_bounds = array<i64: 1>, scalar_prefetch = 0 : i64, scratch_operands = 0 : i64, tpu.core_type = #tpu.core_type<tc>, window_params = [{transform_indices = @transform_0, window_bounds = array<i64: 8, 256>}, {pipeline_mode = #tpu.pipeline_mode<synchronous>, transform_indices = @transform_1, window_bounds = array<i64: 256, 128>}, {transform_indices = @transform_2, window_bounds = array<i64: 8, 128>}]} {
    %c0 = arith.constant 0 : index
    %c0_0 = arith.constant 0 : index
    %0 = vector.load %arg1[%c0, %c0_0] : memref<8x256xf32, #tpu.memory_space<vmem>>, vector<8x256xf32>
    %c0_1 = arith.constant 0 : index
    %c0_2 = arith.constant 0 : index
    %1 = vector.load %arg2[%c0_1, %c0_2] : memref<256x128xf32, #tpu.memory_space<vmem>>, vector<256x128xf32>
    %cst = arith.constant dense<0.000000e+00> : vector<8x128xf32>
    %2 = tpu.matmul %0, %1, %cst {dimension_numbers = #tpu.dot_dimension_numbers<[1], [0], [0], [1], [0, 0, 1, 1], [], []>} : vector<8x256xf32>, vector<256x128xf32>, vector<8x128xf32> -> vector<8x128xf32>
    %c0_3 = arith.constant 0 : index
    %c0_4 = arith.constant 0 : index
    %3 = vector.load %arg3[%c0_3, %c0_4] : memref<8x128xf32, #tpu.memory_space<vmem>>, vector<8x128xf32>
    tpu.vector_store %arg3[%c0_3, %c0_4], %2 {strides = array<i32>} : memref<8x128xf32, #tpu.memory_space<vmem>>, vector<8x128xf32>,
    return
  }
  func.func @transform_0(%arg0: i32) -> (i32, i32) {
    %c0_i32 = arith.constant 0 : i32
    %c0_i32_0 = arith.constant 0 : i32
    return %arg0, %c0_i32 : i32, i32
  }
  func.func @transform_1(%arg0: i32) -> (i32, i32) {
    %c0_i32 = arith.constant 0 : i32
    %c0_i32_0 = arith.constant 0 : i32
    %c0_i32_1 = arith.constant 0 : i32
    return %c0_i32, %c0_i32_0 : i32, i32
  }
  func.func @transform_2(%arg0: i32) -> (i32, i32) {
    %c0_i32 = arith.constant 0 : i32
    %c0_i32_0 = arith.constant 0 : i32
    return %arg0, %c0_i32 : i32, i32
  }
}

module attributes {stable_mosaic.version = 11 : i64} {
  func.func @kernel(%arg0: i32, %arg1: memref<8x256xf32, #tpu.memory_space<vmem>>, %arg2: memref<256x128xf32, #tpu.memory_space<vmem>>, %arg3: memref<8x128xf32, #tpu.memory_space<vmem>>) attributes {dimension_semantics = [#tpu.dimension_semantics<parallel>], iteration_bounds = array<i64: 1>, scalar_prefetch = 0 : i64, scratch_operands = 0 : i64, tpu.core_type = #tpu.core_type<tc>, window_params = [{transform_indices = @transform_0, window_bounds = array<i64: 8, 256>}, {pipeline_mode = #tpu.pipeline_mode<synchronous>, transform_indices = @transform_1, window_bounds = array<i64: 256, 128>}, {transform_indices = @transform_2, window_bounds = array<i64: 8, 128>}]} {
    %c0 = arith.constant 0 : index
    %c0_0 = arith.constant 0 : index
    %0 = vector.load %arg1[%c0, %c0_0] : memref<8x256xf32, #tpu.memory_space<vmem>>, vector<8x256xf32>
    %c0_1 = arith.constant 0 : index
    %c0_2 = arith.constant 0 : index
    %1 = vector.load %arg2[%c0_1, %c0_2] : memref<256x128xf32, #tpu.memory_space<vmem>>, vector<256x128xf32>
    %cst = arith.constant dense<0.000000e+00> : vector<8x128xf32>
    %2 = tpu.matmul %0, %1, %cst {dimension_numbers = #tpu.dot_dimension_numbers<[1], [0], [0], [1], [0, 0, 1, 1], [], []>} : vector<8x256xf32>, vector<256x128xf32>, vector<8x128xf32> -> vector<8x128xf32>
    %c0_3 = arith.constant 0 : index
    %c0_4 = arith.constant 0 : index
    %3 = vector.load %arg3[%c0_3, %c0_4] : memref<8x128xf32, #tpu.memory_space<vmem>>, vector<8x128xf32>
    tpu.vector_store %arg3[%c0_3, %c0_4], %2 {strides = array<i32>} : memref<8x128xf32, #tpu.memory_space<vmem>>, vector<8x128xf32>,
    return
  }
  func.func @transform_0(%arg0: i32) -> (i32, i32) {
    %c0_i32 = arith.constant 0 : i32
    %c0_i32_0 = arith.constant 0 : i32
    return %arg0, %c0_i32 : i32, i32
  }
  func.func @transform_1(%arg0: i32) -> (i32, i32) {
    %c0_i32 = arith.constant 0 : i32
    %c0_i32_0 = arith.constant 0 : i32
    %c0_i32_1 = arith.constant 0 : i32
    return %c0_i32, %c0_i32_0 : i32, i32
  }
  func.func @transform_2(%arg0: i32) -> (i32, i32) {
    %c0_i32 = arith.constant 0 : i32
    %c0_i32_0 = arith.constant 0 : i32
    return %arg0, %c0_i32 : i32, i32
  }
}

</mosaic_0001>

<llo_original>
// kernel: tpu_custom_call.1
$region0: #{tpu_custom_call.1}
  #allocation0 [shape = 'u32[]', space=smem, size = 0x4, offset = 0x4, fixed_abs, tag = 'smem constant byte address 0x4 - core index']
  #allocation1 [shape = 'u32[144,128]{1,0:T(1,128)}', space=vmem, size = 0x12000, scoped, tag = 'internal scratch']
  %s0 = inlined_call_operand.hbm [shape: f32[8,256], index: 0, kind: input, shape index: {}]
  %s1 = inlined_call_operand.hbm [shape: f32[256,128], index: 1, kind: input, shape index: {}]
  %s2 = inlined_call_operand.hbm [shape: f32[8,128], index: 2, kind: output, shape index: {}]
  %s3 = sld [smem:[#allocation0]]
  $region26: #{tpu_custom_call.1} parent=0
    _
  %s5 = ssub.s32 1, %s3
  %s6 = scalar_select 0, %s5, %s3
  $region1: #{tpu_custom_call.1} parent=0
    #allocation2 [shape = 'u8[8192]{0}', space=vmem, size = 0x2000, scoped, tag = 'input window, operand 0, single buffered']
    #allocation3 [shape = 's32[1]{0}', space=sflag, size = 0x4, scoped, tag = 'scoped memory for tpu_custom_call.1']
    #allocation4 [shape = 's32[1]{0}', space=sflag, size = 0x4, scoped, tag = 'scoped memory for tpu_custom_call.1']
    #allocation5 [shape = 'u8[131072]{0}', space=vmem, size = 0x20000, scoped, tag = 'input window, operand 1, single buffered']
    #allocation6 [shape = 's32[1]{0}', space=sflag, size = 0x4, scoped, tag = 'scoped memory for tpu_custom_call.1']
    #allocation7 [shape = 'u8[4096]{0}', space=vmem, size = 0x1000, scoped, tag = 'output window, operand 0, single buffered']
    %7 = vsyncpa [#allocation3], 0
    %8 = vsyncpa [#allocation6], 0
    %9 = vsyncpa [#allocation4], 0
    // Predicated region
    $region2: #{tpu_custom_call.1} parent=1 // pred_check
      _
    $region3: #{tpu_custom_call.1} parent=1 // pred_check_branch
      %11 = sbr.rel (0) target = $region5
    $region4: #{tpu_custom_call.1} parent=1 // pred_region
      %s13 = ssub.s32 256, 256
      %14 = vsyncadd [#allocation3], %s13
      %s16 = sshll.u32 [#allocation2], 4
      %s17 = int_to_ptr.vmem [resolvable:$true] %s16
      %19 = dma.hbm_to_vmem [thread:$0]  %s0, 256, %s17, [#allocation3]
    $region5: #{tpu_custom_call.1} parent=1 // pred_fallthru
      _
    // Predicated region
    $region6: #{tpu_custom_call.1} parent=1 // pred_check
      _
    $region7: #{tpu_custom_call.1} parent=1 // pred_check_branch
      %21 = sbr.rel (0) target = $region9
    $region8: #{tpu_custom_call.1} parent=1 // pred_region
      %s23 = ssub.s32 4096, 4096
      %24 = vsyncadd [#allocation6], %s23
      %s25 = sshll.u32 [#allocation5], 4
      %s26 = int_to_ptr.vmem [resolvable:$true] %s25
      %31 = dma.hbm_to_vmem [thread:$0]  %s1, 4096, %s26, [#allocation6], 128, 128, 8
    $region9: #{tpu_custom_call.1} parent=1 // pred_fallthru
      _
    // Predicated region
    $region10: #{tpu_custom_call.1} parent=1 // pred_check
      _
    $region11: #{tpu_custom_call.1} parent=1 // pred_check_branch
      %33 = sbr.rel (0) target = $region13
    $region12: #{tpu_custom_call.1} parent=1 // pred_region
      %34 = dma.done [#allocation3], 256
    $region13: #{tpu_custom_call.1} parent=1 // pred_fallthru
      _
    // Predicated region
    $region14: #{tpu_custom_call.1} parent=1 // pred_check
      _
    $region15: #{tpu_custom_call.1} parent=1 // pred_check_branch
      %36 = sbr.rel (0) target = $region17
    $region16: #{tpu_custom_call.1} parent=1 // pred_region
      %37 = dma.done [#allocation6], 4096
    $region17: #{tpu_custom_call.1} parent=1 // pred_fallthru
      _
    %v38 = vld [vmem:[#allocation2] sm:$0xff]
    %v39 = vld [vmem:[#allocation2 + $0x8] sm:$0xff]
    %v40 = vld [vmem:[#allocation5] sm:$0xff]
    %v41 = vld [vmem:[#allocation5 + $0x8] sm:$0xff]
    %v42 = vld [vmem:[#allocation5 + $0x10] sm:$0xff]
    %v43 = vld [vmem:[#allocation5 + $0x18] sm:$0xff]
    %v44 = vld [vmem:[#allocation5 + $0x20] sm:$0xff]
    %v45 = vld [vmem:[#allocation5 + $0x28] sm:$0xff]
    %v46 = vld [vmem:[#allocation5 + $0x30] sm:$0xff]
    %v47 = vld [vmem:[#allocation5 + $0x38] sm:$0xff]
    %v48 = vld [vmem:[#allocation5 + $0x40] sm:$0xff]
    %v49 = vld [vmem:[#allocation5 + $0x48] sm:$0xff]
    %v50 = vld [vmem:[#allocation5 + $0x50] sm:$0xff]
    %v51 = vld [vmem:[#allocation5 + $0x58] sm:$0xff]
    %v52 = vld [vmem:[#allocation5 + $0x60] sm:$0xff]
    %v53 = vld [vmem:[#allocation5 + $0x68] sm:$0xff]
    %v54 = vld [vmem:[#allocation5 + $0x70] sm:$0xff]
    %v55 = vld [vmem:[#allocation5 + $0x78] sm:$0xff]
    %v56 = vld [vmem:[#allocation5 + $0x80] sm:$0xff]
    %v57 = vld [vmem:[#allocation5 + $0x88] sm:$0xff]
    %v58 = vld [vmem:[#allocation5 + $0x90] sm:$0xff]
    %v59 = vld [vmem:[#allocation5 + $0x98] sm:$0xff]
    %v60 = vld [vmem:[#allocation5 + $0xa0] sm:$0xff]
    %v61 = vld [vmem:[#allocation5 + $0xa8] sm:$0xff]
    %v62 = vld [vmem:[#allocation5 + $0xb0] sm:$0xff]
    %v63 = vld [vmem:[#allocation5 + $0xb8] sm:$0xff]
    %v64 = vld [vmem:[#allocation5 + $0xc0] sm:$0xff]
    %v65 = vld [vmem:[#allocation5 + $0xc8] sm:$0xff]
    %v66 = vld [vmem:[#allocation5 + $0xd0] sm:$0xff]
    %v67 = vld [vmem:[#allocation5 + $0xd8] sm:$0xff]
    %v68 = vld [vmem:[#allocation5 + $0xe0] sm:$0xff]
    %v69 = vld [vmem:[#allocation5 + $0xe8] sm:$0xff]
    %v70 = vld [vmem:[#allocation5 + $0xf0] sm:$0xff]
    %v71 = vld [vmem:[#allocation5 + $0xf8] sm:$0xff]
    %72 = vmatprep.subr.mxu0 0.0
    %73 = vmatpush1.msra.mxu0 %v55
    %74 = vmatprep.subr.mxu0 0.0
    %75 = vmatpush1.msra.mxu0 %v54
    %76 = vmatprep.subr.mxu0 0.0
    %77 = vmatpush1.msra.mxu0 %v53
    %78 = vmatprep.subr.mxu0 0.0
    %79 = vmatpush1.msra.mxu0 %v52
    %80 = vmatprep.subr.mxu0 0.0
    %81 = vmatpush1.msra.mxu0 %v51
    %82 = vmatprep.subr.mxu0 0.0
    %83 = vmatpush1.msra.mxu0 %v50
    %84 = vmatprep.subr.mxu0 0.0
    %85 = vmatpush1.msra.mxu0 %v49
    %86 = vmatprep.subr.mxu0 0.0
    %87 = vmatpush1.msra.mxu0 %v48
    %88 = vmatprep.subr.mxu0 0.0
    %89 = vmatpush1.msra.mxu0 %v47
    %90 = vmatprep.subr.mxu0 0.0
    %91 = vmatpush1.msra.mxu0 %v46
    %92 = vmatprep.subr.mxu0 0.0
    %93 = vmatpush1.msra.mxu0 %v45
    %94 = vmatprep.subr.mxu0 0.0
    %95 = vmatpush1.msra.mxu0 %v44
    %96 = vmatprep.subr.mxu0 0.0
    %97 = vmatpush1.msra.mxu0 %v43
    %98 = vmatprep.subr.mxu0 0.0
    %99 = vmatpush1.msra.mxu0 %v42
    %100 = vmatprep.subr.mxu0 0.0
    %101 = vmatpush1.msra.mxu0 %v41
    %102 = vmatprep.subr.mxu0 0.0
    %103 = vmatpush1.msra.mxu0 %v40
    %104 = vmatprep.subr.mxu0 0.0
    %105 = vmatpush2.msra.mxu0 %v71
    %106 = vmatprep.subr.mxu0 0.0
    %107 = vmatpush2.msra.mxu0 %v70
    %108 = vmatprep.subr.mxu0 0.0
    %109 = vmatpush2.msra.mxu0 %v69
    %110 = vmatprep.subr.mxu0 0.0
    %111 = vmatpush2.msra.mxu0 %v68
    %112 = vmatprep.subr.mxu0 0.0
    %113 = vmatpush2.msra.mxu0 %v67
    %114 = vmatprep.subr.mxu0 0.0
    %115 = vmatpush2.msra.mxu0 %v66
    %116 = vmatprep.subr.mxu0 0.0
    %117 = vmatpush2.msra.mxu0 %v65
    %118 = vmatprep.subr.mxu0 0.0
    %119 = vmatpush2.msra.mxu0 %v64
    %120 = vmatprep.subr.mxu0 0.0
    %121 = vmatpush2.msra.mxu0 %v63
    %122 = vmatprep.subr.mxu0 0.0
    %123 = vmatpush2.msra.mxu0 %v62
    %124 = vmatprep.subr.mxu0 0.0
    %125 = vmatpush2.msra.mxu0 %v61
    %126 = vmatprep.subr.mxu0 0.0
    %127 = vmatpush2.msra.mxu0 %v60
    %128 = vmatprep.subr.mxu0 0.0
    %129 = vmatpush2.msra.mxu0 %v59
    %130 = vmatprep.subr.mxu0 0.0
    %131 = vmatpush2.msra.mxu0 %v58
    %132 = vmatprep.subr.mxu0 0.0
    %133 = vmatpush2.msra.mxu0 %v57
    %134 = vmatprep.subr.mxu0 0.0
    %135 = vmatpush2.msra.mxu0 %v56
    %136 = vmatprep.mubr.f32.mxu0 %v39
    %137 = vmatmul.mubr.f32.gmra.mxu0 %v38
    %v138 = vpop.f32.mrf.mxu0
    %v139 = vadd.f32 0.0, %v138
    %v140 = vpop.f32.mrf.mxu0
    %141 = vdwg.mxu0
    %142 = vst [vmem:[#allocation7] sm:$0xff] %v139
    // Predicated region
    $region18: #{tpu_custom_call.1} parent=1 // pred_check
      _
    $region19: #{tpu_custom_call.1} parent=1 // pred_check_branch
      %144 = sbr.rel (0) target = $region21
    $region20: #{tpu_custom_call.1} parent=1 // pred_region
      %s146 = ssub.s32 128, 128
      %147 = vsyncadd [#allocation4], %s146
      %s149 = sshll.u32 [#allocation7], 4
      %s150 = int_to_ptr.vmem [resolvable:$true] %s149
      %152 = dma.vmem_to_hbm [thread:$0]  %s150, 128, %s2, [#allocation4]
    $region21: #{tpu_custom_call.1} parent=1 // pred_fallthru
      _
    // Predicated region
    $region22: #{tpu_custom_call.1} parent=1 // pred_check
      _
    $region23: #{tpu_custom_call.1} parent=1 // pred_check_branch
      %154 = sbr.rel (0) target = $region25
    $region24: #{tpu_custom_call.1} parent=1 // pred_region
      %155 = dma.done [#allocation4], 128
    $region25: #{tpu_custom_call.1} parent=1 // pred_fallthru
      _
    %156 = vsyncpa [#allocation3], 1
    %157 = vsyncpa [#allocation6], 1
    %158 = vsyncpa [#allocation4], 1

// kernel: tpu_custom_call.1
$region0: #{tpu_custom_call.1}
  #allocation0 [shape = 'u32[]', space=smem, size = 0x4, offset = 0x4, fixed_abs, tag = 'smem constant byte address 0x4 - core index']
  #allocation1 [shape = 'u32[144,128]{1,0:T(1,128)}', space=vmem, size = 0x12000, scoped, tag = 'internal scratch']
  %s0 = inlined_call_operand.hbm [shape: f32[8,256], index: 0, kind: input, shape index: {}]
  %s1 = inlined_call_operand.hbm [shape: f32[256,128], index: 1, kind: input, shape index: {}]
  %s2 = inlined_call_operand.hbm [shape: f32[8,128], index: 2, kind: output, shape index: {}]
  %s3 = sld [smem:[#allocation0]]
  $region26: #{tpu_custom_call.1} parent=0
    _
  %s5 = ssub.s32 1, %s3
  %s6 = scalar_select 0, %s5, %s3
  $region1: #{tpu_custom_call.1} parent=0
    #allocation2 [shape = 'u8[8192]{0}', space=vmem, size = 0x2000, scoped, tag = 'input window, operand 0, single buffered']
    #allocation3 [shape = 's32[1]{0}', space=sflag, size = 0x4, scoped, tag = 'scoped memory for tpu_custom_call.1']
    #allocation4 [shape = 's32[1]{0}', space=sflag, size = 0x4, scoped, tag = 'scoped memory for tpu_custom_call.1']
    #allocation5 [shape = 'u8[131072]{0}', space=vmem, size = 0x20000, scoped, tag = 'input window, operand 1, single buffered']
    #allocation6 [shape = 's32[1]{0}', space=sflag, size = 0x4, scoped, tag = 'scoped memory for tpu_custom_call.1']
    #allocation7 [shape = 'u8[4096]{0}', space=vmem, size = 0x1000, scoped, tag = 'output window, operand 0, single buffered']
    %7 = vsyncpa [#allocation3], 0
    %8 = vsyncpa [#allocation6], 0
    %9 = vsyncpa [#allocation4], 0
    // Predicated region
    $region2: #{tpu_custom_call.1} parent=1 // pred_check
      _
    $region3: #{tpu_custom_call.1} parent=1 // pred_check_branch
      %11 = sbr.rel (0) target = $region5
    $region4: #{tpu_custom_call.1} parent=1 // pred_region
      %s13 = ssub.s32 256, 256
      %14 = vsyncadd [#allocation3], %s13
      %s16 = sshll.u32 [#allocation2], 4
      %s17 = int_to_ptr.vmem [resolvable:$true] %s16
      %19 = dma.hbm_to_vmem [thread:$0]  %s0, 256, %s17, [#allocation3]
    $region5: #{tpu_custom_call.1} parent=1 // pred_fallthru
      _
    // Predicated region
    $region6: #{tpu_custom_call.1} parent=1 // pred_check
      _
    $region7: #{tpu_custom_call.1} parent=1 // pred_check_branch
      %21 = sbr.rel (0) target = $region9
    $region8: #{tpu_custom_call.1} parent=1 // pred_region
      %s23 = ssub.s32 4096, 4096
      %24 = vsyncadd [#allocation6], %s23
      %s25 = sshll.u32 [#allocation5], 4
      %s26 = int_to_ptr.vmem [resolvable:$true] %s25
      %31 = dma.hbm_to_vmem [thread:$0]  %s1, 4096, %s26, [#allocation6], 128, 128, 8
    $region9: #{tpu_custom_call.1} parent=1 // pred_fallthru
      _
    // Predicated region
    $region10: #{tpu_custom_call.1} parent=1 // pred_check
      _
    $region11: #{tpu_custom_call.1} parent=1 // pred_check_branch
      %33 = sbr.rel (0) target = $region13
    $region12: #{tpu_custom_call.1} parent=1 // pred_region
      %34 = dma.done [#allocation3], 256
    $region13: #{tpu_custom_call.1} parent=1 // pred_fallthru
      _
    // Predicated region
    $region14: #{tpu_custom_call.1} parent=1 // pred_check
      _
    $region15: #{tpu_custom_call.1} parent=1 // pred_check_branch
      %36 = sbr.rel (0) target = $region17
    $region16: #{tpu_custom_call.1} parent=1 // pred_region
      %37 = dma.done [#allocation6], 4096
    $region17: #{tpu_custom_call.1} parent=1 // pred_fallthru
      _
    %v38 = vld [vmem:[#allocation2] sm:$0xff]
    %v39 = vld [vmem:[#allocation2 + $0x8] sm:$0xff]
    %v40 = vld [vmem:[#allocation5] sm:$0xff]
    %v41 = vld [vmem:[#allocation5 + $0x8] sm:$0xff]
    %v42 = vld [vmem:[#allocation5 + $0x10] sm:$0xff]
    %v43 = vld [vmem:[#allocation5 + $0x18] sm:$0xff]
    %v44 = vld [vmem:[#allocation5 + $0x20] sm:$0xff]
    %v45 = vld [vmem:[#allocation5 + $0x28] sm:$0xff]
    %v46 = vld [vmem:[#allocation5 + $0x30] sm:$0xff]
    %v47 = vld [vmem:[#allocation5 + $0x38] sm:$0xff]
    %v48 = vld [vmem:[#allocation5 + $0x40] sm:$0xff]
    %v49 = vld [vmem:[#allocation5 + $0x48] sm:$0xff]
    %v50 = vld [vmem:[#allocation5 + $0x50] sm:$0xff]
    %v51 = vld [vmem:[#allocation5 + $0x58] sm:$0xff]
    %v52 = vld [vmem:[#allocation5 + $0x60] sm:$0xff]
    %v53 = vld [vmem:[#allocation5 + $0x68] sm:$0xff]
    %v54 = vld [vmem:[#allocation5 + $0x70] sm:$0xff]
    %v55 = vld [vmem:[#allocation5 + $0x78] sm:$0xff]
    %v56 = vld [vmem:[#allocation5 + $0x80] sm:$0xff]
    %v57 = vld [vmem:[#allocation5 + $0x88] sm:$0xff]
    %v58 = vld [vmem:[#allocation5 + $0x90] sm:$0xff]
    %v59 = vld [vmem:[#allocation5 + $0x98] sm:$0xff]
    %v60 = vld [vmem:[#allocation5 + $0xa0] sm:$0xff]
    %v61 = vld [vmem:[#allocation5 + $0xa8] sm:$0xff]
    %v62 = vld [vmem:[#allocation5 + $0xb0] sm:$0xff]
    %v63 = vld [vmem:[#allocation5 + $0xb8] sm:$0xff]
    %v64 = vld [vmem:[#allocation5 + $0xc0] sm:$0xff]
    %v65 = vld [vmem:[#allocation5 + $0xc8] sm:$0xff]
    %v66 = vld [vmem:[#allocation5 + $0xd0] sm:$0xff]
    %v67 = vld [vmem:[#allocation5 + $0xd8] sm:$0xff]
    %v68 = vld [vmem:[#allocation5 + $0xe0] sm:$0xff]
    %v69 = vld [vmem:[#allocation5 + $0xe8] sm:$0xff]
    %v70 = vld [vmem:[#allocation5 + $0xf0] sm:$0xff]
    %v71 = vld [vmem:[#allocation5 + $0xf8] sm:$0xff]
    %72 = vmatprep.subr.mxu0 0.0
    %73 = vmatpush1.msra.mxu0 %v55
    %74 = vmatprep.subr.mxu0 0.0
    %75 = vmatpush1.msra.mxu0 %v54
    %76 = vmatprep.subr.mxu0 0.0
    %77 = vmatpush1.msra.mxu0 %v53
    %78 = vmatprep.subr.mxu0 0.0
    %79 = vmatpush1.msra.mxu0 %v52
    %80 = vmatprep.subr.mxu0 0.0
    %81 = vmatpush1.msra.mxu0 %v51
    %82 = vmatprep.subr.mxu0 0.0
    %83 = vmatpush1.msra.mxu0 %v50
    %84 = vmatprep.subr.mxu0 0.0
    %85 = vmatpush1.msra.mxu0 %v49
    %86 = vmatprep.subr.mxu0 0.0
    %87 = vmatpush1.msra.mxu0 %v48
    %88 = vmatprep.subr.mxu0 0.0
    %89 = vmatpush1.msra.mxu0 %v47
    %90 = vmatprep.subr.mxu0 0.0
    %91 = vmatpush1.msra.mxu0 %v46
    %92 = vmatprep.subr.mxu0 0.0
    %93 = vmatpush1.msra.mxu0 %v45
    %94 = vmatprep.subr.mxu0 0.0
    %95 = vmatpush1.msra.mxu0 %v44
    %96 = vmatprep.subr.mxu0 0.0
    %97 = vmatpush1.msra.mxu0 %v43
    %98 = vmatprep.subr.mxu0 0.0
    %99 = vmatpush1.msra.mxu0 %v42
    %100 = vmatprep.subr.mxu0 0.0
    %101 = vmatpush1.msra.mxu0 %v41
    %102 = vmatprep.subr.mxu0 0.0
    %103 = vmatpush1.msra.mxu0 %v40
    %104 = vmatprep.subr.mxu0 0.0
    %105 = vmatpush2.msra.mxu0 %v71
    %106 = vmatprep.subr.mxu0 0.0
    %107 = vmatpush2.msra.mxu0 %v70
    %108 = vmatprep.subr.mxu0 0.0
    %109 = vmatpush2.msra.mxu0 %v69
    %110 = vmatprep.subr.mxu0 0.0
    %111 = vmatpush2.msra.mxu0 %v68
    %112 = vmatprep.subr.mxu0 0.0
    %113 = vmatpush2.msra.mxu0 %v67
    %114 = vmatprep.subr.mxu0 0.0
    %115 = vmatpush2.msra.mxu0 %v66
    %116 = vmatprep.subr.mxu0 0.0
    %117 = vmatpush2.msra.mxu0 %v65
    %118 = vmatprep.subr.mxu0 0.0
    %119 = vmatpush2.msra.mxu0 %v64
    %120 = vmatprep.subr.mxu0 0.0
    %121 = vmatpush2.msra.mxu0 %v63
    %122 = vmatprep.subr.mxu0 0.0
    %123 = vmatpush2.msra.mxu0 %v62
    %124 = vmatprep.subr.mxu0 0.0
    %125 = vmatpush2.msra.mxu0 %v61
    %126 = vmatprep.subr.mxu0 0.0
    %127 = vmatpush2.msra.mxu0 %v60
    %128 = vmatprep.subr.mxu0 0.0
    %129 = vmatpush2.msra.mxu0 %v59
    %130 = vmatprep.subr.mxu0 0.0
    %131 = vmatpush2.msra.mxu0 %v58
    %132 = vmatprep.subr.mxu0 0.0
    %133 = vmatpush2.msra.mxu0 %v57
    %134 = vmatprep.subr.mxu0 0.0
    %135 = vmatpush2.msra.mxu0 %v56
    %136 = vmatprep.mubr.f32.mxu0 %v39
    %137 = vmatmul.mubr.f32.gmra.mxu0 %v38
    %v138 = vpop.f32.mrf.mxu0
    %v139 = vadd.f32 0.0, %v138
    %v140 = vpop.f32.mrf.mxu0
    %141 = vdwg.mxu0
    %142 = vst [vmem:[#allocation7] sm:$0xff] %v139
    // Predicated region
    $region18: #{tpu_custom_call.1} parent=1 // pred_check
      _
    $region19: #{tpu_custom_call.1} parent=1 // pred_check_branch
      %144 = sbr.rel (0) target = $region21
    $region20: #{tpu_custom_call.1} parent=1 // pred_region
      %s146 = ssub.s32 128, 128
      %147 = vsyncadd [#allocation4], %s146
      %s149 = sshll.u32 [#allocation7], 4
      %s150 = int_to_ptr.vmem [resolvable:$true] %s149
      %152 = dma.vmem_to_hbm [thread:$0]  %s150, 128, %s2, [#allocation4]
    $region21: #{tpu_custom_call.1} parent=1 // pred_fallthru
      _
    // Predicated region
    $region22: #{tpu_custom_call.1} parent=1 // pred_check
      _
    $region23: #{tpu_custom_call.1} parent=1 // pred_check_branch
      %154 = sbr.rel (0) target = $region25
    $region24: #{tpu_custom_call.1} parent=1 // pred_region
      %155 = dma.done [#allocation4], 128
    $region25: #{tpu_custom_call.1} parent=1 // pred_fallthru
      _
    %156 = vsyncpa [#allocation3], 1
    %157 = vsyncpa [#allocation6], 1
    %158 = vsyncpa [#allocation4], 1

</llo_original>
